<compile_context>
chip_gen: v6e
topology: v6e:2x2x1
jax: 0.10.0
libtpu: 0.0.40
codegen_flags: <defaults>
</compile_context>

<pallas_src>
import math

import jax
import jax.numpy as jnp
from jax.experimental import pallas as pl
from jax.experimental.pallas import tpu as pltpu

_LANES = 128
_LOG_2PI = math.log(2.0 * math.pi)


def _pack_inputs(mu, L, x, rows_pad):
    """One fused host pass: (B,2)+(B,2,2) -> planes-first (5, rows_pad, 128)."""
    B = x.shape[0]
    f32 = jnp.float32
    cols = [
        (x[:, 0] - mu[:, 0]).astype(f32),   # d0
        (x[:, 1] - mu[:, 1]).astype(f32),   # d1
        L[:, 0, 0].astype(f32),             # l00
        L[:, 1, 0].astype(f32),             # l10
        L[:, 1, 1].astype(f32),             # l11
    ]
    n_pad = rows_pad * _LANES - B
    if n_pad:
        zpad = jnp.zeros((n_pad,), f32)     # zeros are fine: tail is masked/sliced
        cols = [jnp.concatenate([c, zpad]) for c in cols]
    # (5, B_pad) planes-first; sample b sits at (b // 128, b % 128).  The final
    # reshape is contiguous (metadata-only) -> no transpose pass over HBM.
    return jnp.stack(cols, axis=0).reshape(5, rows_pad, _LANES)


def _make_kernels(batch, tb, mask_tail):
    """Kernels closed over the static batch size / block rows."""

    def nll_block(p_ref):
        d0, d1 = p_ref[0], p_ref[1]                 # (tb, 128) slabs
        l00, l10, l11 = p_ref[2], p_ref[3], p_ref[4]
        prod = l00 * l11
        # One EUP rcp push + 2 Newton-Raphson refinements on the VPU (large
        # slack); full f32 accuracy, no exact-divide sequence.
        inv = pl.reciprocal(prod, approx=True)
        inv = inv * (2.0 - prod * inv)
        inv = inv * (2.0 - prod * inv)
        # Forward substitution L y = diff, fused through the single reciprocal:
        #   y0 = d0 / l00 = d0 * l11 * inv
        #   y1 = (d1 - l10 * y0) / l11 = (d1*l00 - l10*d0) * inv
        y0 = d0 * l11 * inv
        y1 = (d1 * l00 - l10 * d0) * inv
        quad = y0 * y0 + y1 * y1
        # log_det = 2*(log l00 + log l11) = 2*log(l00*l11)  -> single EUP log
        # nll = 0.5*(quad + log_det + 2*log(2*pi))
        return 0.5 * quad + jnp.log(prod) + jnp.float32(_LOG_2PI)

    def mean_kernel(p_ref, psum_ref):
        nll = nll_block(p_ref)                                  # (tb, 128)
        if mask_tail:
            base = pl.program_id(0) * (tb * _LANES)
            row = jax.lax.broadcasted_iota(jnp.int32, nll.shape, 0)
            lane = jax.lax.broadcasted_iota(jnp.int32, nll.shape, 1)
            nll = jnp.where(base + row * _LANES + lane < batch, nll, 0.0)
        # Lane-dense per-step partial sums (1, 1, 128).
        psum_ref[...] = jnp.sum(nll, axis=0, keepdims=True)[None]

    def nll_kernel(p_ref, o_ref):
        o_ref[...] = nll_block(p_ref)

    return mean_kernel, nll_kernel


def gaussian_nll_loss_2d(mu, L, x, *, reduce=True, block_rows=1024):
    """mu: (B, 2), L: (B, 2, 2) lower Cholesky (positive diag), x: (B, 2)."""
    B, D = mu.shape
    assert D == 2, "GaussianNLLLoss2d is specialized for D == 2"
    assert L.shape == (B, D, D) and x.shape == (B, D)

    rows = -(-B // _LANES)                              # ceil(B / 128)
    block_rows = max(8, min(int(block_rows), 2048))     # VMEM-safe on all gens
    if rows <= 8:
        tb, grid = rows, 1                              # tiny batch: single step
    else:
        # >= 2 grid steps (use both TensorCores on v7x); rows/step a multiple
        # of 8 (tiling constraint), capped by block_rows.
        grid_target = max(2, -(-rows // block_rows))
        tb = -(-rows // grid_target)                    # ~equal split per step
        tb = -(-tb // 8) * 8                            # round up to mult of 8
        grid = -(-rows // tb)
    rows_pad = grid * tb
    n_pad = rows_pad * _LANES - B

    packed = _pack_inputs(mu, L, x, rows_pad)           # (5, rows_pad, 128)
    mean_kernel, nll_kernel = _make_kernels(B, tb, n_pad > 0)

    in_specs = [pl.BlockSpec((5, tb, _LANES), lambda i: (0, i, 0))]
    params = pltpu.CompilerParams(dimension_semantics=("parallel",))

    if reduce:
        partials = pl.pallas_call(
            mean_kernel,
            out_shape=jax.ShapeDtypeStruct((grid, 1, _LANES), jnp.float32),
            grid_spec=pltpu.PrefetchScalarGridSpec(
                num_scalar_prefetch=0,
                grid=(grid,),
                in_specs=in_specs,
                out_specs=pl.BlockSpec((1, 1, _LANES), lambda i: (i, 0, 0)),
            ),
            compiler_params=params,
        )(packed)
        return jnp.sum(partials) / jnp.float32(B)

    nll = pl.pallas_call(
        nll_kernel,
        out_shape=jax.ShapeDtypeStruct((rows_pad, _LANES), jnp.float32),
        grid_spec=pltpu.PrefetchScalarGridSpec(
            num_scalar_prefetch=0,
            grid=(grid,),
            in_specs=in_specs,
            out_specs=pl.BlockSpec((tb, _LANES), lambda i: (i, 0)),
        ),
        compiler_params=params,
    )(packed)
    return nll.reshape(rows_pad * _LANES)[:B]


def _reference(mu, L, x, reduce=True):
    diff = x - mu                                            # (B, D)
    sigma = L @ jnp.swapaxes(L, 1, 2)                        # (B, D, D)
    z = jnp.linalg.solve(sigma, diff[..., None])[..., 0]     # (B, D)
    quad = jnp.einsum("bi,bi->b", diff, z)
    log_det = 2.0 * jnp.sum(jnp.log(jnp.diagonal(L, axis1=1, axis2=2)), axis=1)
    nll = 0.5 * (quad + log_det + 2.0 * jnp.log(2.0 * jnp.pi))
    return jnp.mean(nll) if reduce else nll


def _make_inputs(key, B, D=2):
    k1, k2, k3, k4 = jax.random.split(key, 4)
    mu = jax.random.normal(k1, (B, D), jnp.float32)
    x = jax.random.normal(k2, (B, D), jnp.float32)
    A = jax.random.normal(k3, (B, D, D), jnp.float32)
    diag = jnp.abs(jax.random.normal(k4, (B, D), jnp.float32)) + 0.5
    # Valid lower Cholesky factor: strictly-lower random, positive diagonal.
    L = jnp.tril(A, k=-1) + jax.vmap(jnp.diag)(diag)
    return mu, L, x


if __name__ == "__main__":
    # Primary small test: B = 256 (2 lane-rows, single grid step).
    mu, L, x = _make_inputs(jax.random.PRNGKey(0), B=256)

    out_mean = jax.block_until_ready(gaussian_nll_loss_2d(mu, L, x, reduce=True))
    ref_mean = _reference(mu, L, x, reduce=True)
    assert jnp.allclose(out_mean, ref_mean, rtol=1e-4, atol=1e-4), (out_mean, ref_mean)

    out_nll = jax.block_until_ready(gaussian_nll_loss_2d(mu, L, x, reduce=False))
    ref_nll = _reference(mu, L, x, reduce=False)
    assert jnp.allclose(out_nll, ref_nll, rtol=1e-4, atol=1e-4)

    # Ragged batch (exercises the in-kernel tail mask / host-side slice).
    mu2, L2, x2 = _make_inputs(jax.random.PRNGKey(1), B=300)
    assert jnp.allclose(gaussian_nll_loss_2d(mu2, L2, x2, reduce=True),
                        _reference(mu2, L2, x2, True), rtol=1e-4, atol=1e-4)
    assert jnp.allclose(gaussian_nll_loss_2d(mu2, L2, x2, reduce=False),
                        _reference(mu2, L2, x2, False), rtol=1e-4, atol=1e-4)

    # Multi-block grid with an explicitly small block (padding + partial sums).
    mu3, L3, x3 = _make_inputs(jax.random.PRNGKey(2), B=2560)
    assert jnp.allclose(
        gaussian_nll_loss_2d(mu3, L3, x3, reduce=True, block_rows=8),
        _reference(mu3, L3, x3, True), rtol=1e-4, atol=1e-4)
    assert jnp.allclose(
        gaussian_nll_loss_2d(mu3, L3, x3, reduce=False, block_rows=8),
        _reference(mu3, L3, x3, False), rtol=1e-4, atol=1e-4)

    # Default (large) blocks with a 2-step "parallel" grid.
    mu4, L4, x4 = _make_inputs(jax.random.PRNGKey(3), B=4096)
    out4 = jax.block_until_ready(gaussian_nll_loss_2d(mu4, L4, x4, reduce=True))
    assert jnp.allclose(out4, _reference(mu4, L4, x4, True), rtol=1e-4, atol=1e-4)

    print("KERNEL_OK")
</pallas_src>

<mosaic_0001>
module attributes {stable_mosaic.version = 11 : i64} {
  func.func @mean_kernel(%arg0: i32, %arg1: memref<5x2x128xf32, #tpu.memory_space<vmem>>, %arg2: memref<1x1x128xf32, #tpu.memory_space<vmem>>) attributes {dimension_semantics = [#tpu.dimension_semantics<parallel>], iteration_bounds = array<i64: 1>, scalar_prefetch = 0 : i64, scratch_operands = 0 : i64, tpu.core_type = #tpu.core_type<tc>, window_params = [{transform_indices = @transform_0, window_bounds = array<i64: 5, 2, 128>}, {transform_indices = @transform_1, window_bounds = array<i64: 1, 1, 128>}]} {
    %c0 = arith.constant 0 : index
    %c0_0 = arith.constant 0 : index
    %c0_1 = arith.constant 0 : index
    %0 = vector.load %arg1[%c0, %c0_0, %c0_1] : memref<5x2x128xf32, #tpu.memory_space<vmem>>, vector<1x2x128xf32>
    %1 = vector.shape_cast %0 : vector<1x2x128xf32> to vector<2x128xf32>
    %c1 = arith.constant 1 : index
    %c0_2 = arith.constant 0 : index
    %c0_3 = arith.constant 0 : index
    %2 = vector.load %arg1[%c1, %c0_2, %c0_3] : memref<5x2x128xf32, #tpu.memory_space<vmem>>, vector<1x2x128xf32>
    %3 = vector.shape_cast %2 : vector<1x2x128xf32> to vector<2x128xf32>
    %c2 = arith.constant 2 : index
    %c0_4 = arith.constant 0 : index
    %c0_5 = arith.constant 0 : index
    %4 = vector.load %arg1[%c2, %c0_4, %c0_5] : memref<5x2x128xf32, #tpu.memory_space<vmem>>, vector<1x2x128xf32>
    %5 = vector.shape_cast %4 : vector<1x2x128xf32> to vector<2x128xf32>
    %c3 = arith.constant 3 : index
    %c0_6 = arith.constant 0 : index
    %c0_7 = arith.constant 0 : index
    %6 = vector.load %arg1[%c3, %c0_6, %c0_7] : memref<5x2x128xf32, #tpu.memory_space<vmem>>, vector<1x2x128xf32>
    %7 = vector.shape_cast %6 : vector<1x2x128xf32> to vector<2x128xf32>
    %c4 = arith.constant 4 : index
    %c0_8 = arith.constant 0 : index
    %c0_9 = arith.constant 0 : index
    %8 = vector.load %arg1[%c4, %c0_8, %c0_9] : memref<5x2x128xf32, #tpu.memory_space<vmem>>, vector<1x2x128xf32>
    %9 = vector.shape_cast %8 : vector<1x2x128xf32> to vector<2x128xf32>
    %10 = arith.mulf %5, %9 : vector<2x128xf32>
    %11 = tpu.reciprocal %10 {approx = true} : vector<2x128xf32> -> vector<2x128xf32>
    %12 = arith.mulf %10, %11 : vector<2x128xf32>
    %cst = arith.constant 2.000000e+00 : f32
    %13 = vector.broadcast %cst : f32 to vector<2x128xf32>
    %14 = arith.subf %13, %12 : vector<2x128xf32>
    %15 = arith.mulf %11, %14 : vector<2x128xf32>
    %16 = arith.mulf %10, %15 : vector<2x128xf32>
    %cst_10 = arith.constant 2.000000e+00 : f32
    %17 = vector.broadcast %cst_10 : f32 to vector<2x128xf32>
    %18 = arith.subf %17, %16 : vector<2x128xf32>
    %19 = arith.mulf %15, %18 : vector<2x128xf32>
    %20 = arith.mulf %1, %9 : vector<2x128xf32>
    %21 = arith.mulf %20, %19 : vector<2x128xf32>
    %22 = arith.mulf %3, %5 : vector<2x128xf32>
    %23 = arith.mulf %7, %1 : vector<2x128xf32>
    %24 = arith.subf %22, %23 : vector<2x128xf32>
    %25 = arith.mulf %24, %19 : vector<2x128xf32>
    %26 = arith.mulf %21, %21 : vector<2x128xf32>
    %27 = arith.mulf %25, %25 : vector<2x128xf32>
    %28 = arith.addf %26, %27 : vector<2x128xf32>
    %cst_11 = arith.constant 5.000000e-01 : f32
    %29 = vector.broadcast %cst_11 : f32 to vector<2x128xf32>
    %30 = arith.mulf %29, %28 : vector<2x128xf32>
    %31 = math.log %10 : vector<2x128xf32>
    %32 = arith.addf %30, %31 : vector<2x128xf32>
    %cst_12 = arith.constant 1.83787704 : f32
    %33 = vector.broadcast %cst_12 : f32 to vector<2x128xf32>
    %34 = arith.addf %32, %33 : vector<2x128xf32>
    %cst_13 = arith.constant dense<0.000000e+00> : vector<128xf32>
    %35 = vector.multi_reduction <add>, %34, %cst_13 [0] : vector<2x128xf32> to vector<128xf32>
    %36 = vector.shape_cast %35 : vector<128xf32> to vector<1x128xf32>
    %37 = vector.shape_cast %36 : vector<1x128xf32> to vector<1x1x128xf32>
    %c0_14 = arith.constant 0 : index
    %c0_15 = arith.constant 0 : index
    %c0_16 = arith.constant 0 : index
    %38 = vector.load %arg2[%c0_14, %c0_15, %c0_16] : memref<1x1x128xf32, #tpu.memory_space<vmem>>, vector<1x1x128xf32>
    tpu.vector_store %arg2[%c0_14, %c0_15, %c0_16], %37 {strides = array<i32>} : memref<1x1x128xf32, #tpu.memory_space<vmem>>, vector<1x1x128xf32>,
    return
  }
  func.func @transform_0(%arg0: i32) -> (i32, i32, i32) {
    %c0_i32 = arith.constant 0 : i32
    %c0_i32_0 = arith.constant 0 : i32
    %c0_i32_1 = arith.constant 0 : i32
    return %c0_i32, %arg0, %c0_i32_0 : i32, i32, i32
  }
  func.func @transform_1(%arg0: i32) -> (i32, i32, i32) {
    %c0_i32 = arith.constant 0 : i32
    %c0_i32_0 = arith.constant 0 : i32
    %c0_i32_1 = arith.constant 0 : i32
    return %arg0, %c0_i32, %c0_i32_0 : i32, i32, i32
  }
}

</mosaic_0001>

<llo_original>
// kernel: tpu_custom_call.1
$region0: #{tpu_custom_call.1}
  #allocation0 [shape = 'u32[]', space=smem, size = 0x4, offset = 0x4, fixed_abs, tag = 'smem constant byte address 0x4 - core index']
  #allocation1 [shape = 'u32[144,128]{1,0:T(1,128)}', space=vmem, size = 0x12000, scoped, tag = 'internal scratch']
  %s0 = inlined_call_operand.hbm [shape: f32[5,2,128], index: 0, kind: input, shape index: {}]
  %s1 = inlined_call_operand.hbm [shape: f32[1,1,128], index: 1, kind: output, shape index: {}]
  %s2 = sld [smem:[#allocation0]]
  $region18: #{tpu_custom_call.1} parent=0
    _
  %s4 = ssub.s32 1, %s2
  %s5 = scalar_select 0, %s4, %s2
  $region1: #{tpu_custom_call.1} parent=0
    #allocation2 [shape = 'u8[5120]{0}', space=vmem, size = 0x1400, scoped, tag = 'input window, operand 0, single buffered']
    #allocation3 [shape = 's32[1]{0}', space=sflag, size = 0x4, scoped, tag = 'scoped memory for tpu_custom_call.1']
    #allocation4 [shape = 's32[1]{0}', space=sflag, size = 0x4, scoped, tag = 'scoped memory for tpu_custom_call.1']
    #allocation5 [shape = 'u8[512]{0}', space=vmem, size = 0x400, scoped, tag = 'output window, operand 0, single buffered']
    %6 = vsyncpa [#allocation3], 0
    %7 = vsyncpa [#allocation4], 0
    // Predicated region
    $region2: #{tpu_custom_call.1} parent=1 // pred_check
      _
    $region3: #{tpu_custom_call.1} parent=1 // pred_check_branch
      %9 = sbr.rel (0) target = $region5
    $region4: #{tpu_custom_call.1} parent=1 // pred_region
      %s11 = ssub.s32 160, 160
      %12 = vsyncadd [#allocation3], %s11
      %s13 = sshll.u32 [#allocation2], 4
      %s14 = int_to_ptr.vmem [resolvable:$true] %s13
      %19 = dma.hbm_to_vmem [thread:$0]  %s0, 160, %s14, [#allocation3], 32, 32, 2
    $region5: #{tpu_custom_call.1} parent=1 // pred_fallthru
      _
    // Predicated region
    $region6: #{tpu_custom_call.1} parent=1 // pred_check
      _
    $region7: #{tpu_custom_call.1} parent=1 // pred_check_branch
      %21 = sbr.rel (0) target = $region9
    $region8: #{tpu_custom_call.1} parent=1 // pred_region
      %22 = dma.done [#allocation3], 160
    $region9: #{tpu_custom_call.1} parent=1 // pred_fallthru
      _
    %v23 = vld [vmem:[#allocation2] sm:$0x3]
    %s24 = scalar_lea.vmem [#allocation2], 2
    %v25 = vld [vmem:[%s24] sm:$0x3]
    %s26 = scalar_lea.vmem [#allocation2], 4
    %v27 = vld [vmem:[%s26] sm:$0x3]
    %s28 = scalar_lea.vmem [#allocation2], 6
    %v29 = vld [vmem:[%s28] sm:$0x3]
    %s30 = scalar_lea.vmem [#allocation2], 8
    %v31 = vld [vmem:[%s30] sm:$0x3]
    %v32 = vmul.f32 %v27, %v31
    %v33 = vrcp.pop %v32
    %v34 = vmul.f32 %v32, %v33
    %v35 = vsub.f32 2.0, %v34
    %v36 = vmul.f32 %v33, %v35
    %v37 = vmul.f32 %v32, %v36
    %v38 = vsub.f32 2.0, %v37
    %v39 = vmul.f32 %v36, %v38
    %v40 = vmul.f32 %v23, %v31
    %v41 = vmul.f32 %v40, %v39
    %v42 = vmul.f32 %v25, %v27
    %v43 = vmul.f32 %v29, %v23
    %v44 = vsub.f32 %v42, %v43
    %v45 = vmul.f32 %v44, %v39
    %v46 = vmul.f32 %v41, %v41
    %v47 = vmul.f32 %v45, %v45
    %v48 = vadd.f32 %v46, %v47
    %v49 = vmul.f32 %v48, 0.5
    %v50 = vlog2.pop %v32
    %v51 = vmul.f32 %v50, 0.6931472
    %v52 = vadd.f32 %v49, %v51
    %v53 = vadd.f32 %v52, 1.837877
    %vm54 = vcmask 1041408
    %v55 = vsel %vm54, %v53, 0.0
    %v56 = vrot.slane %v55, 4
    %v57 = vadd.f32 %v55, %v56
    %v58 = vrot.slane %v57, 2
    %v59 = vadd.f32 %v57, %v58
    %v60 = vrot.slane %v59, 1
    %v61 = vadd.f32 %v59, %v60
    %62 = vst [vmem:[#allocation5] sm:$0x1] %v61
    // Predicated region
    $region10: #{tpu_custom_call.1} parent=1 // pred_check
      _
    $region11: #{tpu_custom_call.1} parent=1 // pred_check_branch
      %64 = sbr.rel (0) target = $region13
    $region12: #{tpu_custom_call.1} parent=1 // pred_region
      %s66 = ssub.s32 16, 16
      %67 = vsyncadd [#allocation4], %s66
      %s69 = sshll.u32 [#allocation5], 4
      %s70 = int_to_ptr.vmem [resolvable:$true] %s69
      %72 = dma.vmem_to_hbm [thread:$0]  %s70, 16, %s1, [#allocation4]
    $region13: #{tpu_custom_call.1} parent=1 // pred_fallthru
      _
    // Predicated region
    $region14: #{tpu_custom_call.1} parent=1 // pred_check
      _
    $region15: #{tpu_custom_call.1} parent=1 // pred_check_branch
      %74 = sbr.rel (0) target = $region17
    $region16: #{tpu_custom_call.1} parent=1 // pred_region
      %75 = dma.done [#allocation4], 16
    $region17: #{tpu_custom_call.1} parent=1 // pred_fallthru
      _
    %76 = vsyncpa [#allocation3], 1
    %77 = vsyncpa [#allocation4], 1

</llo_original>
